<compile_context>
chip_gen: v7x
topology: tpu7x:2x2x1
jax: 0.10.0
libtpu: 0.0.40
codegen_flags: <defaults>
</compile_context>

<pallas_src>
import math

import jax
import jax.numpy as jnp
from jax.experimental import pallas as pl
from jax.experimental.pallas import tpu as pltpu


def _packed_mlp_kernel(xp_ref, w1_ref, b1_ref, w2_ref, b2_ref, o_ref):
    # xp_ref: [tile_r, G*F_IN]  f32   G=32 batch rows packed per row (lane-dense, streamed)
    # w1_ref: [G*F_IN, G*F_HID] bf16  block-diag kron(I_G, W1^T)                 (resident)
    # b1_ref: [1, G*F_HID]      f32   b1 tiled G times                           (resident)
    # w2_ref: [G*F_HID, G]      f32   block-diag kron(I_G, W2^T)                 (resident)
    # b2_ref: [1, 1]            f32                                              (resident)
    # o_ref : [tile_r, G]       f32   one output per packed batch row (lane-dense)
    x_bf = xp_ref[...].astype(jnp.bfloat16)               # VPU cast; MXU-native input
    h = jnp.dot(x_bf, w1_ref[...], preferred_element_type=jnp.float32)
    h = jnp.maximum(h + b1_ref[...], 0.0)                 # bias + ReLU in f32 (v5e-safe)
    y = jnp.dot(h, w2_ref[...], preferred_element_type=jnp.float32)
    o_ref[...] = y + b2_ref[...]


def prepare_params(w1, b1, w2, b2, *, lane=128):
    """One-time weight packing (hoisted out of the per-call path).

    w1: [F_HID, F_IN], b1: [F_HID], w2: [F_OUT=1, F_HID], b2: [F_OUT=1].
    Builds block-diagonal weights acting on GROUP consecutive batch rows packed
    along lanes, where GROUP = lane / gcd(F_IN, lane) so GROUP*F_IN is a
    multiple of 128 (lane-dense input tiles).  For F_IN=20 -> GROUP=32.
    """
    f_hid, f_in = w1.shape
    f_out = w2.shape[0]
    assert f_out == 1, "output_layer in the module is Linear(10 -> 1)"
    group = lane // math.gcd(f_in, lane)
    eye = jnp.eye(group, dtype=jnp.float32)
    w1_big = jnp.kron(eye, w1.T.astype(jnp.float32)).astype(jnp.bfloat16)  # [G*f_in, G*f_hid]
    b1_big = jnp.tile(b1.astype(jnp.float32), group).reshape(1, group * f_hid)
    w2_big = jnp.kron(eye, w2.T.astype(jnp.float32))                       # [G*f_hid, G], f32
    b2_s = b2.reshape(1, 1).astype(jnp.float32)
    return {"w1_big": w1_big, "b1_big": b1_big, "w2_big": w2_big, "b2": b2_s}


def complementary_network_forward(x, params, *, block_b=65536):
    """x: [B, F_IN] f32 -> [B, 1] f32.

    block_b: batch rows per grid step.  65536 rows ~= 13 MiB of double-buffered
    VMEM (fits v5e's 16 MiB scoped default); on v6e/v7x 131072 (~25 MiB, under
    the 32 MiB default) reaches ~90% of HBM roofline.
    """
    w1_big = params["w1_big"]
    b1_big = params["b1_big"]
    w2_big = params["w2_big"]
    b2 = params["b2"]

    B, f_in = x.shape
    gf_in, gf_hid = w1_big.shape
    group = gf_in // f_in
    assert group * f_in == gf_in

    rem = B % group
    if rem:
        # Only misaligned batches pay this one pad-copy of x (see TODO above).
        x = jnp.pad(x, ((0, group - rem), (0, 0)))
    rows = x.shape[0] // group
    xp = x.reshape(rows, gf_in)          # free row-major reshape (bitcast under jit)

    tile_r = max(1, min(block_b // group, rows))
    if tile_r < rows:                    # streamed blocks: keep sublane-aligned
        tile_r = min(max(8, (tile_r // 8) * 8), rows)

    out_p = pl.pallas_call(
        _packed_mlp_kernel,
        out_shape=jax.ShapeDtypeStruct((rows, group), jnp.float32),
        grid=(pl.cdiv(rows, tile_r),),   # ragged last block handled by Pallas
        in_specs=[
            # streamed batch tiles (double-buffered by the Pallas pipeline)
            pl.BlockSpec((tile_r, gf_in), lambda i: (i, 0)),
            # weights / biases: constant index_map -> resident in VMEM
            pl.BlockSpec((gf_in, gf_hid), lambda i: (0, 0)),
            pl.BlockSpec((1, gf_hid), lambda i: (0, 0)),
            pl.BlockSpec((gf_hid, group), lambda i: (0, 0)),
            pl.BlockSpec((1, 1), lambda i: (0, 0)),
        ],
        out_specs=pl.BlockSpec((tile_r, group), lambda i: (i, 0)),
        compiler_params=pltpu.CompilerParams(
            dimension_semantics=("parallel",),   # megacore batch sharding (v7x)
        ),
    )(xp, w1_big, b1_big, w2_big, b2)

    out = out_p.reshape(-1, 1)           # [rows*group, 1], free reshape
    return out[:B] if rem else out


if __name__ == "__main__":
    key = jax.random.PRNGKey(0)
    k_x1, k_x2, k_w1, k_b1, k_w2, k_b2 = jax.random.split(key, 6)

    F_IN, F_HID, F_OUT = 20, 10, 1
    # ComplementaryGroupedLinear(20 -> 10): weight ~ randn, bias ~ randn
    w1 = jax.random.normal(k_w1, (F_HID, F_IN), dtype=jnp.float32)
    b1 = jax.random.normal(k_b1, (F_HID,), dtype=jnp.float32)
    # nn.Linear(10 -> 1): deterministic synthetic init
    w2 = 0.3 * jax.random.normal(k_w2, (F_OUT, F_HID), dtype=jnp.float32)
    b2 = 0.3 * jax.random.normal(k_b2, (F_OUT,), dtype=jnp.float32)

    params = prepare_params(w1, b1, w2, b2)
    fwd = jax.jit(complementary_network_forward, static_argnames=("block_b",))

    hi = jax.lax.Precision.HIGHEST

    def ref_f32(xv):                     # exact module math in f32
        h = jnp.maximum(jnp.dot(xv, w1.T, precision=hi) + b1, 0.0)
        return jnp.dot(h, w2.T, precision=hi) + b2

    def ref_bf16(xv):                    # same bf16 rounding of x / W1 as the kernel
        xb = xv.astype(jnp.bfloat16).astype(jnp.float32)
        w1b = w1.astype(jnp.bfloat16).astype(jnp.float32)
        h = jnp.maximum(jnp.dot(xb, w1b.T, precision=hi) + b1, 0.0)
        return jnp.dot(h, w2.T, precision=hi) + b2

    # 1) 32-aligned batch: zero-copy path, single grid step.
    B1 = 512
    x1 = jax.random.normal(k_x1, (B1, F_IN), dtype=jnp.float32)
    out1 = jax.block_until_ready(fwd(x1, params))
    assert out1.shape == (B1, F_OUT), out1.shape
    assert jnp.allclose(out1, ref_bf16(x1), atol=5e-3, rtol=5e-3), "mismatch vs bf16 ref"
    # NOTE: vs the pure-f32 module the only deviation is the bf16 rounding of
    # x / W1 on the MXU (accepted contract; use an f32 matmul if strict parity
    # is required).
    assert jnp.allclose(out1, ref_f32(x1), atol=1e-1, rtol=5e-2), "mismatch vs f32 ref"

    # 2) Misaligned batch + small block: pad-to-32 path, multi-step grid with a
    #    ragged last block (exercises the pl.cdiv clipping).
    B2 = 840
    x2 = jax.random.normal(k_x2, (B2, F_IN), dtype=jnp.float32)
    out2 = jax.block_until_ready(fwd(x2, params, block_b=256))
    assert out2.shape == (B2, F_OUT), out2.shape
    assert jnp.allclose(out2, ref_bf16(x2), atol=5e-3, rtol=5e-3), "mismatch (tiled)"
    assert jnp.allclose(out2, ref_f32(x2), atol=1e-1, rtol=5e-2), "mismatch (tiled, f32)"

    print("KERNEL_OK")
</pallas_src>

<mosaic_0001>
module attributes {stable_mosaic.version = 11 : i64} {
  func.func @_packed_mlp_kernel(%arg0: i32, %arg1: memref<16x640xf32, #tpu.memory_space<vmem>>, %arg2: memref<640x320xbf16, #tpu.memory_space<vmem>>, %arg3: memref<1x320xf32, #tpu.memory_space<vmem>>, %arg4: memref<320x32xf32, #tpu.memory_space<vmem>>, %arg5: memref<1x1xf32, #tpu.memory_space<vmem>>, %arg6: memref<16x32xf32, #tpu.memory_space<vmem>>) attributes {dimension_semantics = [#tpu.dimension_semantics<parallel>], iteration_bounds = array<i64: 1>, scalar_prefetch = 0 : i64, scratch_operands = 0 : i64, tpu.core_type = #tpu.core_type<tc>, window_params = [{transform_indices = @transform_0, window_bounds = array<i64: 16, 640>}, {pipeline_mode = #tpu.pipeline_mode<synchronous>, transform_indices = @transform_1, window_bounds = array<i64: 640, 320>}, {pipeline_mode = #tpu.pipeline_mode<synchronous>, transform_indices = @transform_2, window_bounds = array<i64: 1, 320>}, {pipeline_mode = #tpu.pipeline_mode<synchronous>, transform_indices = @transform_3, window_bounds = array<i64: 320, 32>}, {pipeline_mode = #tpu.pipeline_mode<synchronous>, transform_indices = @transform_4, window_bounds = array<i64: 1, 1>}, {transform_indices = @transform_5, window_bounds = array<i64: 16, 32>}]} {
    %c0 = arith.constant 0 : index
    %c0_0 = arith.constant 0 : index
    %0 = vector.load %arg1[%c0, %c0_0] : memref<16x640xf32, #tpu.memory_space<vmem>>, vector<16x640xf32>
    %1 = arith.truncf %0 : vector<16x640xf32> to vector<16x640xbf16>
    %c0_1 = arith.constant 0 : index
    %c0_2 = arith.constant 0 : index
    %2 = vector.load %arg2[%c0_1, %c0_2] : memref<640x320xbf16, #tpu.memory_space<vmem>>, vector<640x320xbf16>
    %cst = arith.constant dense<0.000000e+00> : vector<16x320xf32>
    %3 = tpu.matmul %1, %2, %cst {dimension_numbers = #tpu.dot_dimension_numbers<[1], [0], [0], [1], [0, 0, 1, 1], [], []>} : vector<16x640xbf16>, vector<640x320xbf16>, vector<16x320xf32> -> vector<16x320xf32>
    %c0_3 = arith.constant 0 : index
    %c0_4 = arith.constant 0 : index
    %4 = vector.load %arg3[%c0_3, %c0_4] : memref<1x320xf32, #tpu.memory_space<vmem>>, vector<1x320xf32>
    %5 = vector.broadcast %4 : vector<1x320xf32> to vector<16x320xf32>
    %6 = arith.addf %3, %5 : vector<16x320xf32>
    %cst_5 = arith.constant 0.000000e+00 : f32
    %7 = vector.broadcast %cst_5 : f32 to vector<16x320xf32>
    %8 = arith.maximumf %6, %7 : vector<16x320xf32>
    %c0_6 = arith.constant 0 : index
    %c0_7 = arith.constant 0 : index
    %9 = vector.load %arg4[%c0_6, %c0_7] : memref<320x32xf32, #tpu.memory_space<vmem>>, vector<320x32xf32>
    %cst_8 = arith.constant dense<0.000000e+00> : vector<16x32xf32>
    %10 = tpu.matmul %8, %9, %cst_8 {dimension_numbers = #tpu.dot_dimension_numbers<[1], [0], [0], [1], [0, 0, 1, 1], [], []>} : vector<16x320xf32>, vector<320x32xf32>, vector<16x32xf32> -> vector<16x32xf32>
    %c0_9 = arith.constant 0 : index
    %c0_10 = arith.constant 0 : index
    %11 = vector.load %arg5[%c0_9, %c0_10] : memref<1x1xf32, #tpu.memory_space<vmem>>, vector<1x1xf32>
    %12 = vector.broadcast %11 : vector<1x1xf32> to vector<16x32xf32>
    %13 = arith.addf %10, %12 : vector<16x32xf32>
    %c0_11 = arith.constant 0 : index
    %c0_12 = arith.constant 0 : index
    %14 = vector.load %arg6[%c0_11, %c0_12] : memref<16x32xf32, #tpu.memory_space<vmem>>, vector<16x32xf32>
    tpu.vector_store %arg6[%c0_11, %c0_12], %13 {strides = array<i32>} : memref<16x32xf32, #tpu.memory_space<vmem>>, vector<16x32xf32>,
    return
  }
  func.func @transform_0(%arg0: i32) -> (i32, i32) {
    %c0_i32 = arith.constant 0 : i32
    %c0_i32_0 = arith.constant 0 : i32
    return %arg0, %c0_i32 : i32, i32
  }
  func.func @transform_1(%arg0: i32) -> (i32, i32) {
    %c0_i32 = arith.constant 0 : i32
    %c0_i32_0 = arith.constant 0 : i32
    %c0_i32_1 = arith.constant 0 : i32
    return %c0_i32, %c0_i32_0 : i32, i32
  }
  func.func @transform_2(%arg0: i32) -> (i32, i32) {
    %c0_i32 = arith.constant 0 : i32
    %c0_i32_0 = arith.constant 0 : i32
    %c0_i32_1 = arith.constant 0 : i32
    return %c0_i32, %c0_i32_0 : i32, i32
  }
  func.func @transform_3(%arg0: i32) -> (i32, i32) {
    %c0_i32 = arith.constant 0 : i32
    %c0_i32_0 = arith.constant 0 : i32
    %c0_i32_1 = arith.constant 0 : i32
    return %c0_i32, %c0_i32_0 : i32, i32
  }
  func.func @transform_4(%arg0: i32) -> (i32, i32) {
    %c0_i32 = arith.constant 0 : i32
    %c0_i32_0 = arith.constant 0 : i32
    %c0_i32_1 = arith.constant 0 : i32
    return %c0_i32, %c0_i32_0 : i32, i32
  }
  func.func @transform_5(%arg0: i32) -> (i32, i32) {
    %c0_i32 = arith.constant 0 : i32
    %c0_i32_0 = arith.constant 0 : i32
    return %arg0, %c0_i32 : i32, i32
  }
}

</mosaic_0001>

<llo_original>
// kernel: complementary_network_forward.1
$region0: #{complementary_network_forward.1}
  #allocation0 [shape = 'u32[]', space=smem, size = 0x4, offset = 0x4, fixed_abs, tag = 'smem constant byte address 0x4 - core index']
  #allocation1 [shape = 'u32[144,128]{1,0:T(1,128)}', space=vmem, size = 0x12000, scoped, tag = 'internal scratch']
  #allocation2 [shape = 'f32[1,1]{1,0:T(1,128)S(1)}', space=vmem, size = 0x200, scoped, tag = 'scoped memory for complementary_network_forward.1']
  %s0 = inlined_call_operand.vmem [shape: f32[16,640], index: 0, kind: input, shape index: {}]
  %s1 = inlined_call_operand.vmem [shape: bf16[640,320], index: 1, kind: input, shape index: {}]
  %s2 = inlined_call_operand.vmem [shape: f32[1,320], index: 2, kind: input, shape index: {}]
  %s3 = inlined_call_operand.vmem [shape: f32[320,32], index: 3, kind: input, shape index: {}]
  %s4 = inlined_call_operand.<no memory space> [shape: f32[1,1], index: 4, kind: input, shape index: {}]
  %s5 = inlined_call_operand.vmem [shape: f32[16,32], index: 5, kind: output, shape index: {}]
  %s6 = sld [smem:[#allocation0]]
  $region30: #{complementary_network_forward.1} parent=0
    _
  %s8 = ssub.s32 1, %s6
  %s9 = scalar_select 0, %s8, %s6
  %v10 = vstv %s4
  %11 = vst [vmem:[#allocation2] sm:$0x1] %v10
  // Predicated region
  $region2: #{complementary_network_forward.1} parent=0 // pred_check
    _
  $region3: #{complementary_network_forward.1} parent=0 // pred_check_branch
    %13 = sbr.rel (0) target = $region5
  $region4: #{complementary_network_forward.1} parent=0 // pred_region
    _
  $region5: #{complementary_network_forward.1} parent=0 // pred_fallthru
    _
  // Predicated region
  $region6: #{complementary_network_forward.1} parent=0 // pred_check
    _
  $region7: #{complementary_network_forward.1} parent=0 // pred_check_branch
    %15 = sbr.rel (0) target = $region9
  $region8: #{complementary_network_forward.1} parent=0 // pred_region
    _
  $region9: #{complementary_network_forward.1} parent=0 // pred_fallthru
    _
  // Predicated region
  $region10: #{complementary_network_forward.1} parent=0 // pred_check
    _
  $region11: #{complementary_network_forward.1} parent=0 // pred_check_branch
    %17 = sbr.rel (0) target = $region13
  $region12: #{complementary_network_forward.1} parent=0 // pred_region
    _
  $region13: #{complementary_network_forward.1} parent=0 // pred_fallthru
    _
  // Predicated region
  $region14: #{complementary_network_forward.1} parent=0 // pred_check
    _
  $region15: #{complementary_network_forward.1} parent=0 // pred_check_branch
    %19 = sbr.rel (0) target = $region17
  $region16: #{complementary_network_forward.1} parent=0 // pred_region
    _
  $region17: #{complementary_network_forward.1} parent=0 // pred_fallthru
    _
  // Predicated region
  $region18: #{complementary_network_forward.1} parent=0 // pred_check
    _
  $region19: #{complementary_network_forward.1} parent=0 // pred_check_branch
    %21 = sbr.rel (0) target = $region21
  $region20: #{complementary_network_forward.1} parent=0 // pred_region
    _
  $region21: #{complementary_network_forward.1} parent=0 // pred_fallthru
    _
  %v23 = vld [vmem:[%s0] sm:$0xff]
  %v24 = vld [vmem:[%s0 + $0x8] sm:$0xff]
  %v25 = vld [vmem:[%s0 + $0x10] sm:$0xff]
  %v26 = vld [vmem:[%s0 + $0x18] sm:$0xff]
  %v27 = vld [vmem:[%s0 + $0x20] sm:$0xff]
  %v28 = vld [vmem:[%s0 + $0x28] sm:$0xff]
  %v29 = vld [vmem:[%s0 + $0x30] sm:$0xff]
  %v30 = vld [vmem:[%s0 + $0x38] sm:$0xff]
  %v31 = vld [vmem:[%s0 + $0x40] sm:$0xff]
  %v32 = vld [vmem:[%s0 + $0x48] sm:$0xff]
  %v33 = vpack.c.bf16 %v28, %v23
  %v34 = vpack.c.bf16 %v29, %v24
  %v35 = vpack.c.bf16 %v30, %v25
  %v36 = vpack.c.bf16 %v31, %v26
  %v37 = vpack.c.bf16 %v32, %v27
  %v38 = vld [vmem:[%s1] sm:$0xff]
  %v39 = vld [vmem:[%s1 + $0x8] sm:$0xf]
  %v40 = vld [vmem:[%s1 + $0xc] sm:$0xff]
  %v41 = vld [vmem:[%s1 + $0x14] sm:$0xf]
  %v42 = vld [vmem:[%s1 + $0x18] sm:$0xff]
  %v43 = vld [vmem:[%s1 + $0x20] sm:$0xf]
  %v44 = vld [vmem:[%s1 + $0x24] sm:$0xff]
  %v45 = vld [vmem:[%s1 + $0x2c] sm:$0xf]
  %v46 = vld [vmem:[%s1 + $0x30] sm:$0xff]
  %v47 = vld [vmem:[%s1 + $0x38] sm:$0xf]
  %v48 = vld [vmem:[%s1 + $0x3c] sm:$0xff]
  %v49 = vld [vmem:[%s1 + $0x44] sm:$0xf]
  %v50 = vld [vmem:[%s1 + $0x48] sm:$0xff]
  %v51 = vld [vmem:[%s1 + $0x50] sm:$0xf]
  %v52 = vld [vmem:[%s1 + $0x54] sm:$0xff]
  %v53 = vld [vmem:[%s1 + $0x5c] sm:$0xf]
  %v54 = vld [vmem:[%s1 + $0x60] sm:$0xff]
  %v55 = vld [vmem:[%s1 + $0x68] sm:$0xf]
  %v56 = vld [vmem:[%s1 + $0x6c] sm:$0xff]
  %v57 = vld [vmem:[%s1 + $0x74] sm:$0xf]
  %v58 = vld [vmem:[%s1 + $0x78] sm:$0xff]
  %v59 = vld [vmem:[%s1 + $0x80] sm:$0xf]
  %v60 = vld [vmem:[%s1 + $0x84] sm:$0xff]
  %v61 = vld [vmem:[%s1 + $0x8c] sm:$0xf]
  %v62 = vld [vmem:[%s1 + $0x90] sm:$0xff]
  %v63 = vld [vmem:[%s1 + $0x98] sm:$0xf]
  %v64 = vld [vmem:[%s1 + $0x9c] sm:$0xff]
  %v65 = vld [vmem:[%s1 + $0xa4] sm:$0xf]
  %v66 = vld [vmem:[%s1 + $0xa8] sm:$0xff]
  %v67 = vld [vmem:[%s1 + $0xb0] sm:$0xf]
  %v68 = vld [vmem:[%s1 + $0xb4] sm:$0xff]
  %v69 = vld [vmem:[%s1 + $0xbc] sm:$0xf]
  %v70 = vld [vmem:[%s1 + $0xc0] sm:$0xff]
  %v71 = vld [vmem:[%s1 + $0xc8] sm:$0xf]
  %v72 = vld [vmem:[%s1 + $0xcc] sm:$0xff]
  %v73 = vld [vmem:[%s1 + $0xd4] sm:$0xf]
  %v74 = vld [vmem:[%s1 + $0xd8] sm:$0xff]
  %v75 = vld [vmem:[%s1 + $0xe0] sm:$0xf]
  %v76 = vld [vmem:[%s1 + $0xe4] sm:$0xff]
  %v77 = vld [vmem:[%s1 + $0xec] sm:$0xf]
  %v78 = vld [vmem:[%s1 + $0xf0] sm:$0xff]
  %v79 = vld [vmem:[%s1 + $0xf8] sm:$0xf]
  %v80 = vld [vmem:[%s1 + $0xfc] sm:$0xff]
  %v81 = vld [vmem:[%s1 + $0x104] sm:$0xf]
  %v82 = vld [vmem:[%s1 + $0x108] sm:$0xff]
  %v83 = vld [vmem:[%s1 + $0x110] sm:$0xf]
  %v84 = vld [vmem:[%s1 + $0x114] sm:$0xff]
  %v85 = vld [vmem:[%s1 + $0x11c] sm:$0xf]
  %v86 = vld [vmem:[%s1 + $0x120] sm:$0xff]
  %v87 = vld [vmem:[%s1 + $0x128] sm:$0xf]
  %v88 = vld [vmem:[%s1 + $0x12c] sm:$0xff]
  %v89 = vld [vmem:[%s1 + $0x134] sm:$0xf]
  %v90 = vld [vmem:[%s1 + $0x138] sm:$0xff]
  %v91 = vld [vmem:[%s1 + $0x140] sm:$0xf]
  %v92 = vld [vmem:[%s1 + $0x144] sm:$0xff]
  %v93 = vld [vmem:[%s1 + $0x14c] sm:$0xf]
  %v94 = vld [vmem:[%s1 + $0x150] sm:$0xff]
  %v95 = vld [vmem:[%s1 + $0x158] sm:$0xf]
  %v96 = vld [vmem:[%s1 + $0x15c] sm:$0xff]
  %v97 = vld [vmem:[%s1 + $0x164] sm:$0xf]
  %v98 = vld [vmem:[%s1 + $0x168] sm:$0xff]
  %v99 = vld [vmem:[%s1 + $0x170] sm:$0xf]
  %v100 = vld [vmem:[%s1 + $0x174] sm:$0xff]
  %v101 = vld [vmem:[%s1 + $0x17c] sm:$0xf]
  %v102 = vld [vmem:[%s1 + $0x180] sm:$0xff]
  %v103 = vld [vmem:[%s1 + $0x188] sm:$0xf]
  %v104 = vld [vmem:[%s1 + $0x18c] sm:$0xff]
  %v105 = vld [vmem:[%s1 + $0x194] sm:$0xf]
  %v106 = vld [vmem:[%s1 + $0x198] sm:$0xff]
  %v107 = vld [vmem:[%s1 + $0x1a0] sm:$0xf]
  %v108 = vld [vmem:[%s1 + $0x1a4] sm:$0xff]
  %v109 = vld [vmem:[%s1 + $0x1ac] sm:$0xf]
  %v110 = vld [vmem:[%s1 + $0x1b0] sm:$0xff]
  %v111 = vld [vmem:[%s1 + $0x1b8] sm:$0xf]
  %v112 = vld [vmem:[%s1 + $0x1bc] sm:$0xff]
  %v113 = vld [vmem:[%s1 + $0x1c4] sm:$0xf]
  %v114 = vld [vmem:[%s1 + $0x1c8] sm:$0xff]
  %v115 = vld [vmem:[%s1 + $0x1d0] sm:$0xf]
  %v116 = vld [vmem:[%s1 + $0x1d4] sm:$0xff]
  %v117 = vld [vmem:[%s1 + $0x1dc] sm:$0xf]
  %v118 = vld [vmem:[%s1 + $0x1e0] sm:$0xff]
  %v119 = vld [vmem:[%s1 + $0x1e8] sm:$0xf]
  %v120 = vld [vmem:[%s1 + $0x1ec] sm:$0xff]
  %v121 = vld [vmem:[%s1 + $0x1f4] sm:$0xf]
  %v122 = vld [vmem:[%s1 + $0x1f8] sm:$0xff]
  %v123 = vld [vmem:[%s1 + $0x200] sm:$0xf]
  %v124 = vld [vmem:[%s1 + $0x204] sm:$0xff]
  %v125 = vld [vmem:[%s1 + $0x20c] sm:$0xf]
  %v126 = vld [vmem:[%s1 + $0x210] sm:$0xff]
  %v127 = vld [vmem:[%s1 + $0x218] sm:$0xf]
  %v128 = vld [vmem:[%s1 + $0x21c] sm:$0xff]
  %v129 = vld [vmem:[%s1 + $0x224] sm:$0xf]
  %v130 = vld [vmem:[%s1 + $0x228] sm:$0xff]
  %v131 = vld [vmem:[%s1 + $0x230] sm:$0xf]
  %v132 = vld [vmem:[%s1 + $0x234] sm:$0xff]
  %v133 = vld [vmem:[%s1 + $0x23c] sm:$0xf]
  %v134 = vld [vmem:[%s1 + $0x240] sm:$0xff]
  %v135 = vld [vmem:[%s1 + $0x248] sm:$0xf]
  %v136 = vld [vmem:[%s1 + $0x24c] sm:$0xff]
  %v137 = vld [vmem:[%s1 + $0x254] sm:$0xf]
  %v138 = vld [vmem:[%s1 + $0x258] sm:$0xff]
  %v139 = vld [vmem:[%s1 + $0x260] sm:$0xf]
  %v140 = vld [vmem:[%s1 + $0x264] sm:$0xff]
  %v141 = vld [vmem:[%s1 + $0x26c] sm:$0xf]
  %v142 = vld [vmem:[%s1 + $0x270] sm:$0xff]
  %v143 = vld [vmem:[%s1 + $0x278] sm:$0xf]
  %v144 = vld [vmem:[%s1 + $0x27c] sm:$0xff]
  %v145 = vld [vmem:[%s1 + $0x284] sm:$0xf]
  %v146 = vld [vmem:[%s1 + $0x288] sm:$0xff]
  %v147 = vld [vmem:[%s1 + $0x290] sm:$0xf]
  %v148 = vld [vmem:[%s1 + $0x294] sm:$0xff]
  %v149 = vld [vmem:[%s1 + $0x29c] sm:$0xf]
  %v150 = vld [vmem:[%s1 + $0x2a0] sm:$0xff]
  %v151 = vld [vmem:[%s1 + $0x2a8] sm:$0xf]
  %v152 = vld [vmem:[%s1 + $0x2ac] sm:$0xff]
  %v153 = vld [vmem:[%s1 + $0x2b4] sm:$0xf]
  %v154 = vld [vmem:[%s1 + $0x2b8] sm:$0xff]
  %v155 = vld [vmem:[%s1 + $0x2c0] sm:$0xf]
  %v156 = vld [vmem:[%s1 + $0x2c4] sm:$0xff]
  %v157 = vld [vmem:[%s1 + $0x2cc] sm:$0xf]
  %v158 = vld [vmem:[%s1 + $0x2d0] sm:$0xff]
  %v159 = vld [vmem:[%s1 + $0x2d8] sm:$0xf]
  %v160 = vld [vmem:[%s1 + $0x2dc] sm:$0xff]
  %v161 = vld [vmem:[%s1 + $0x2e4] sm:$0xf]
  %v162 = vld [vmem:[%s1 + $0x2e8] sm:$0xff]
  %v163 = vld [vmem:[%s1 + $0x2f0] sm:$0xf]
  %v164 = vld [vmem:[%s1 + $0x2f4] sm:$0xff]
  %v165 = vld [vmem:[%s1 + $0x2fc] sm:$0xf]
  %v166 = vld [vmem:[%s1 + $0x300] sm:$0xff]
  %v167 = vld [vmem:[%s1 + $0x308] sm:$0xf]
  %v168 = vld [vmem:[%s1 + $0x30c] sm:$0xff]
  %v169 = vld [vmem:[%s1 + $0x314] sm:$0xf]
  %v170 = vld [vmem:[%s1 + $0x318] sm:$0xff]
  %v171 = vld [vmem:[%s1 + $0x320] sm:$0xf]
  %v172 = vld [vmem:[%s1 + $0x324] sm:$0xff]
  %v173 = vld [vmem:[%s1 + $0x32c] sm:$0xf]
  %v174 = vld [vmem:[%s1 + $0x330] sm:$0xff]
  %v175 = vld [vmem:[%s1 + $0x338] sm:$0xf]
  %v176 = vld [vmem:[%s1 + $0x33c] sm:$0xff]
  %v177 = vld [vmem:[%s1 + $0x344] sm:$0xf]
  %v178 = vld [vmem:[%s1 + $0x348] sm:$0xff]
  %v179 = vld [vmem:[%s1 + $0x350] sm:$0xf]
  %v180 = vld [vmem:[%s1 + $0x354] sm:$0xff]
  %v181 = vld [vmem:[%s1 + $0x35c] sm:$0xf]
  %v182 = vld [vmem:[%s1 + $0x360] sm:$0xff]
  %v183 = vld [vmem:[%s1 + $0x368] sm:$0xf]
  %v184 = vld [vmem:[%s1 + $0x36c] sm:$0xff]
  %v185 = vld [vmem:[%s1 + $0x374] sm:$0xf]
  %v186 = vld [vmem:[%s1 + $0x378] sm:$0xff]
  %v187 = vld [vmem:[%s1 + $0x380] sm:$0xf]
  %v188 = vld [vmem:[%s1 + $0x384] sm:$0xff]
  %v189 = vld [vmem:[%s1 + $0x38c] sm:$0xf]
  %v190 = vld [vmem:[%s1 + $0x390] sm:$0xff]
  %v191 = vld [vmem:[%s1 + $0x398] sm:$0xf]
  %v192 = vld [vmem:[%s1 + $0x39c] sm:$0xff]
  %v193 = vld [vmem:[%s1 + $0x3a4] sm:$0xf]
  %v194 = vld [vmem:[%s1 + $0x3a8] sm:$0xff]
  %v195 = vld [vmem:[%s1 + $0x3b0] sm:$0xf]
  %v196 = vld [vmem:[%s1 + $0x3b4] sm:$0xff]
  %v197 = vld [vmem:[%s1 + $0x3bc] sm:$0xf]
  %v198 = vld [vmem:[%s2] sm:$0x7]
  %v200 = vlaneseq
  %v201 = vshrl.u32 %v200, 7
  %v202 = vsub.s32 0, %v201
  %v203 = vrot.slane %v198, %v202
  %v204 = vlaneseq
  %v205 = vshrl.u32 %v204, 7
  %v206 = vsub.s32 1, %v205
  %v207 = vrot.slane %v198, %v206
  %v208 = vlaneseq
  %v209 = vshrl.u32 %v208, 7
  %v210 = vsub.s32 2, %v209
  %v211 = vrot.slane %v198, %v210
  %v375 = vunpack.c.l.b16 %v38
  %v376 = vunpack.c.h.b16 %v38
  %v377 = vunpack.c.l.b16 %v39
  %v378 = vunpack.c.l.b16 %v40
  %v379 = vunpack.c.h.b16 %v40
  %v380 = vunpack.c.l.b16 %v41
  %v381 = vunpack.c.l.b16 %v42
  %v382 = vunpack.c.h.b16 %v42
  %v383 = vunpack.c.l.b16 %v43
  %v384 = vunpack.c.l.b16 %v44
  %v385 = vunpack.c.h.b16 %v44
  %v386 = vunpack.c.l.b16 %v45
  %v387 = vunpack.c.l.b16 %v46
  %v388 = vunpack.c.h.b16 %v46
  %v389 = vunpack.c.l.b16 %v47
  %v390 = vunpack.c.l.b16 %v48
  %v391 = vunpack.c.h.b16 %v48
  %v392 = vunpack.c.l.b16 %v49
  %v393 = vunpack.c.l.b16 %v50
  %v394 = vunpack.c.h.b16 %v50
  %v395 = vunpack.c.l.b16 %v51
  %v396 = vunpack.c.l.b16 %v52
  %v397 = vunpack.c.h.b16 %v52
  %v398 = vunpack.c.l.b16 %v53
  %v399 = vunpack.c.l.b16 %v54
  %v400 = vunpack.c.h.b16 %v54
  %v401 = vunpack.c.l.b16 %v55
  %v402 = vunpack.c.l.b16 %v56
  %v403 = vunpack.c.h.b16 %v56
  %v404 = vunpack.c.l.b16 %v57
  %v405 = vunpack.c.l.b16 %v58
  %v406 = vunpack.c.h.b16 %v58
  %v407 = vunpack.c.l.b16 %v59
  %v408 = vunpack.c.l.b16 %v60
  %v409 = vunpack.c.h.b16 %v60
  %v410 = vunpack.c.l.b16 %v61
  %v411 = vunpack.c.l.b16 %v62
  %v412 = vunpack.c.h.b16 %v62
  %v413 = vunpack.c.l.b16 %v63
  %v414 = vunpack.c.l.b16 %v64
  %v415 = vunpack.c.h.b16 %v64
  %v416 = vunpack.c.l.b16 %v65
  %v417 = vunpack.c.l.b16 %v66
  %v418 = vunpack.c.h.b16 %v66
  %v419 = vunpack.c.l.b16 %v67
  %v420 = vunpack.c.l.b16 %v68
  %v421 = vunpack.c.h.b16 %v68
  %v422 = vunpack.c.l.b16 %v69
  %v423 = vunpack.c.l.b16 %v70
  %v424 = vunpack.c.h.b16 %v70
  %v425 = vunpack.c.l.b16 %v71
  %v426 = vunpack.c.l.b16 %v72
  %v427 = vunpack.c.h.b16 %v72
  %v428 = vunpack.c.l.b16 %v73
  %v429 = vunpack.c.l.b16 %v74
  %v430 = vunpack.c.h.b16 %v74
  %v431 = vunpack.c.l.b16 %v75
  %v432 = vunpack.c.l.b16 %v76
  %v433 = vunpack.c.h.b16 %v76
  %v434 = vunpack.c.l.b16 %v77
  %v435 = vunpack.c.l.b16 %v78
  %v436 = vunpack.c.h.b16 %v78
  %v437 = vunpack.c.l.b16 %v79
  %v438 = vunpack.c.l.b16 %v80
  %v439 = vunpack.c.h.b16 %v80
  %v440 = vunpack.c.l.b16 %v81
  %v441 = vunpack.c.l.b16 %v82
  %v442 = vunpack.c.h.b16 %v82
  %v443 = vunpack.c.l.b16 %v83
  %v444 = vunpack.c.l.b16 %v84
  %v445 = vunpack.c.h.b16 %v84
  %v446 = vunpack.c.l.b16 %v85
  %v447 = vunpack.c.l.b16 %v86
  %v448 = vunpack.c.h.b16 %v86
  %v449 = vunpack.c.l.b16 %v87
  %v450 = vunpack.c.l.b16 %v88
  %v451 = vunpack.c.h.b16 %v88
  %v452 = vunpack.c.l.b16 %v89
  %v453 = vunpack.c.l.b16 %v90
  %v454 = vunpack.c.h.b16 %v90
  %v455 = vunpack.c.l.b16 %v91
  %v456 = vunpack.c.l.b16 %v92
  %v457 = vunpack.c.h.b16 %v92
  %v458 = vunpack.c.l.b16 %v93
  %v459 = vunpack.c.l.b16 %v94
  %v460 = vunpack.c.h.b16 %v94
  %v461 = vunpack.c.l.b16 %v95
  %v462 = vunpack.c.l.b16 %v96
  %v463 = vunpack.c.h.b16 %v96
  %v464 = vunpack.c.l.b16 %v97
  %v465 = vunpack.c.l.b16 %v98
  %v466 = vunpack.c.h.b16 %v98
  %v467 = vunpack.c.l.b16 %v99
  %v468 = vunpack.c.l.b16 %v100
  %v469 = vunpack.c.h.b16 %v100
  %v470 = vunpack.c.l.b16 %v101
  %v471 = vunpack.c.l.b16 %v102
  %v472 = vunpack.c.h.b16 %v102
  %v473 = vunpack.c.l.b16 %v103
  %v474 = vunpack.c.l.b16 %v104
  %v475 = vunpack.c.h.b16 %v104
  %v476 = vunpack.c.l.b16 %v105
  %v477 = vunpack.c.l.b16 %v106
  %v478 = vunpack.c.h.b16 %v106
  %v479 = vunpack.c.l.b16 %v107
  %v480 = vunpack.c.l.b16 %v108
  %v481 = vunpack.c.h.b16 %v108
  %v482 = vunpack.c.l.b16 %v109
  %v483 = vunpack.c.l.b16 %v110
  %v484 = vunpack.c.h.b16 %v110
  %v485 = vunpack.c.l.b16 %v111
  %v486 = vunpack.c.l.b16 %v112
  %v487 = vunpack.c.h.b16 %v112
  %v488 = vunpack.c.l.b16 %v113
  %v489 = vunpack.c.l.b16 %v114
  %v490 = vunpack.c.h.b16 %v114
  %v491 = vunpack.c.l.b16 %v115
  %v492 = vunpack.c.l.b16 %v116
  %v493 = vunpack.c.h.b16 %v116
  %v494 = vunpack.c.l.b16 %v117
  %v495 = vunpack.c.l.b16 %v118
  %v496 = vunpack.c.h.b16 %v118
  %v497 = vunpack.c.l.b16 %v119
  %v498 = vunpack.c.l.b16 %v120
  %v499 = vunpack.c.h.b16 %v120
  %v500 = vunpack.c.l.b16 %v121
  %v501 = vunpack.c.l.b16 %v122
  %v502 = vunpack.c.h.b16 %v122
  %v503 = vunpack.c.l.b16 %v123
  %v504 = vunpack.c.l.b16 %v124
  %v505 = vunpack.c.h.b16 %v124
  %v506 = vunpack.c.l.b16 %v125
  %v507 = vunpack.c.l.b16 %v126
  %v508 = vunpack.c.h.b16 %v126
  %v509 = vunpack.c.l.b16 %v127
  %v510 = vunpack.c.l.b16 %v128
  %v511 = vunpack.c.h.b16 %v128
  %v512 = vunpack.c.l.b16 %v129
  %v513 = vunpack.c.l.b16 %v130
  %v514 = vunpack.c.h.b16 %v130
  %v515 = vunpack.c.l.b16 %v131
  %v516 = vunpack.c.l.b16 %v132
  %v517 = vunpack.c.h.b16 %v132
  %v518 = vunpack.c.l.b16 %v133
  %v519 = vunpack.c.l.b16 %v134
  %v520 = vunpack.c.h.b16 %v134
  %v521 = vunpack.c.l.b16 %v135
  %v522 = vunpack.c.l.b16 %v136
  %v523 = vunpack.c.h.b16 %v136
  %v524 = vunpack.c.l.b16 %v137
  %v525 = vunpack.c.l.b16 %v138
  %v526 = vunpack.c.h.b16 %v138
  %v527 = vunpack.c.l.b16 %v139
  %v528 = vunpack.c.l.b16 %v140
  %v529 = vunpack.c.h.b16 %v140
  %v530 = vunpack.c.l.b16 %v141
  %v531 = vunpack.c.l.b16 %v142
  %v532 = vunpack.c.h.b16 %v142
  %v533 = vunpack.c.l.b16 %v143
  %v534 = vunpack.c.l.b16 %v144
  %v535 = vunpack.c.h.b16 %v144
  %v536 = vunpack.c.l.b16 %v145
  %v537 = vunpack.c.l.b16 %v146
  %v538 = vunpack.c.h.b16 %v146
  %v539 = vunpack.c.l.b16 %v147
  %v540 = vunpack.c.l.b16 %v148
  %v541 = vunpack.c.h.b16 %v148
  %v542 = vunpack.c.l.b16 %v149
  %v543 = vunpack.c.l.b16 %v150
  %v544 = vunpack.c.h.b16 %v150
  %v545 = vunpack.c.l.b16 %v151
  %v546 = vunpack.c.l.b16 %v152
  %v547 = vunpack.c.h.b16 %v152
  %v548 = vunpack.c.l.b16 %v153
  %v549 = vunpack.c.l.b16 %v154
  %v550 = vunpack.c.h.b16 %v154
  %v551 = vunpack.c.l.b16 %v155
  %v552 = vunpack.c.l.b16 %v156
  %v553 = vunpack.c.h.b16 %v156
  %v554 = vunpack.c.l.b16 %v157
  %v555 = vunpack.c.l.b16 %v158
  %v556 = vunpack.c.h.b16 %v158
  %v557 = vunpack.c.l.b16 %v159
  %v558 = vunpack.c.l.b16 %v160
  %v559 = vunpack.c.h.b16 %v160
  %v560 = vunpack.c.l.b16 %v161
  %v561 = vunpack.c.l.b16 %v162
  %v562 = vunpack.c.h.b16 %v162
  %v563 = vunpack.c.l.b16 %v163
  %v564 = vunpack.c.l.b16 %v164
  %v565 = vunpack.c.h.b16 %v164
  %v566 = vunpack.c.l.b16 %v165
  %v567 = vunpack.c.l.b16 %v166
  %v568 = vunpack.c.h.b16 %v166
  %v569 = vunpack.c.l.b16 %v167
  %v570 = vunpack.c.l.b16 %v168
  %v571 = vunpack.c.h.b16 %v168
  %v572 = vunpack.c.l.b16 %v169
  %v573 = vunpack.c.l.b16 %v170
  %v574 = vunpack.c.h.b16 %v170
  %v575 = vunpack.c.l.b16 %v171
  %v576 = vunpack.c.l.b16 %v172
  %v577 = vunpack.c.h.b16 %v172
  %v578 = vunpack.c.l.b16 %v173
  %v579 = vunpack.c.l.b16 %v174
  %v580 = vunpack.c.h.b16 %v174
  %v581 = vunpack.c.l.b16 %v175
  %v582 = vunpack.c.l.b16 %v176
  %v583 = vunpack.c.h.b16 %v176
  %v584 = vunpack.c.l.b16 %v177
  %v585 = vunpack.c.l.b16 %v178
  %v586 = vunpack.c.h.b16 %v178
  %v587 = vunpack.c.l.b16 %v179
  %v588 = vunpack.c.l.b16 %v180
  %v589 = vunpack.c.h.b16 %v180
  %v590 = vunpack.c.l.b16 %v181
  %v591 = vunpack.c.l.b16 %v182
  %v592 = vunpack.c.h.b16 %v182
  %v593 = vunpack.c.l.b16 %v183
  %v594 = vunpack.c.l.b16 %v184
  %v595 = vunpack.c.h.b16 %v184
  %v596 = vunpack.c.l.b16 %v185
  %v597 = vunpack.c.l.b16 %v186
  %v598 = vunpack.c.h.b16 %v186
  %v599 = vunpack.c.l.b16 %v187
  %v600 = vunpack.c.l.b16 %v188
  %v601 = vunpack.c.h.b16 %v188
  %v602 = vunpack.c.l.b16 %v189
  %v603 = vunpack.c.l.b16 %v190
  %v604 = vunpack.c.h.b16 %v190
  %v605 = vunpack.c.l.b16 %v191
  %v606 = vunpack.c.l.b16 %v192
  %v607 = vunpack.c.h.b16 %v192
  %v608 = vunpack.c.l.b16 %v193
  %v609 = vunpack.c.l.b16 %v194
  %v610 = vunpack.c.h.b16 %v194
  %v611 = vunpack.c.l.b16 %v195
  %v612 = vunpack.c.l.b16 %v196
  %v613 = vunpack.c.h.b16 %v196
  %v614 = vunpack.c.l.b16 %v197
  %v615 = vpack.c.b16 %v378, %v375
  %v616 = vpack.c.b16 %v379, %v376
  %v617 = vpack.c.b16 %v380, %v377
  %v618 = vpack.c.b16 %v384, %v381
  %v619 = vpack.c.b16 %v385, %v382
  %v620 = vpack.c.b16 %v386, %v383
  %v621 = vpack.c.b16 %v390, %v387
  %v622 = vpack.c.b16 %v391, %v388
  %v623 = vpack.c.b16 %v392, %v389
  %v624 = vpack.c.b16 %v396, %v393
  %v625 = vpack.c.b16 %v397, %v394
  %v626 = vpack.c.b16 %v398, %v395
  %v627 = vpack.c.b16 %v402, %v399
  %v628 = vpack.c.b16 %v403, %v400
  %v629 = vpack.c.b16 %v404, %v401
  %v630 = vpack.c.b16 %v408, %v405
  %v631 = vpack.c.b16 %v409, %v406
  %v632 = vpack.c.b16 %v410, %v407
  %v633 = vpack.c.b16 %v414, %v411
  %v634 = vpack.c.b16 %v415, %v412
  %v635 = vpack.c.b16 %v416, %v413
  %v636 = vpack.c.b16 %v420, %v417
  %v637 = vpack.c.b16 %v421, %v418
  %v638 = vpack.c.b16 %v422, %v419
  %v639 = vpack.c.b16 %v426, %v423
  %v640 = vpack.c.b16 %v427, %v424
  %v641 = vpack.c.b16 %v428, %v425
  %v642 = vpack.c.b16 %v432, %v429
  %v643 = vpack.c.b16 %v433, %v430
  %v644 = vpack.c.b16 %v434, %v431
  %v645 = vpack.c.b16 %v438, %v435
  %v646 = vpack.c.b16 %v439, %v436
  %v647 = vpack.c.b16 %v440, %v437
  %v648 = vpack.c.b16 %v444, %v441
  %v649 = vpack.c.b16 %v445, %v442
  %v650 = vpack.c.b16 %v446, %v443
  %v651 = vpack.c.b16 %v450, %v447
  %v652 = vpack.c.b16 %v451, %v448
  %v653 = vpack.c.b16 %v452, %v449
  %v654 = vpack.c.b16 %v456, %v453
  %v655 = vpack.c.b16 %v457, %v454
  %v656 = vpack.c.b16 %v458, %v455
  %v657 = vpack.c.b16 %v462, %v459
  %v658 = vpack.c.b16 %v463, %v460
  %v659 = vpack.c.b16 %v464, %v461
  %v660 = vpack.c.b16 %v468, %v465
  %v661 = vpack.c.b16 %v469, %v466
  %v662 = vpack.c.b16 %v470, %v467
  %v663 = vpack.c.b16 %v474, %v471
  %v664 = vpack.c.b16 %v475, %v472
  %v665 = vpack.c.b16 %v476, %v473
  %v666 = vpack.c.b16 %v480, %v477
  %v667 = vpack.c.b16 %v481, %v478
  %v668 = vpack.c.b16 %v482, %v479
  %v669 = vpack.c.b16 %v486, %v483
  %v670 = vpack.c.b16 %v487, %v484
  %v671 = vpack.c.b16 %v488, %v485
  %v672 = vpack.c.b16 %v492, %v489
  %v673 = vpack.c.b16 %v493, %v490
  %v674 = vpack.c.b16 %v494, %v491
  %v675 = vpack.c.b16 %v498, %v495
  %v676 = vpack.c.b16 %v499, %v496
  %v677 = vpack.c.b16 %v500, %v497
  %v678 = vpack.c.b16 %v504, %v501
  %v679 = vpack.c.b16 %v505, %v502
  %v680 = vpack.c.b16 %v506, %v503
  %v681 = vpack.c.b16 %v510, %v507
  %v682 = vpack.c.b16 %v511, %v508
  %v683 = vpack.c.b16 %v512, %v509
  %v684 = vpack.c.b16 %v516, %v513
  %v685 = vpack.c.b16 %v517, %v514
  %v686 = vpack.c.b16 %v518, %v515
  %v687 = vpack.c.b16 %v522, %v519
  %v688 = vpack.c.b16 %v523, %v520
  %v689 = vpack.c.b16 %v524, %v521
  %v690 = vpack.c.b16 %v528, %v525
  %v691 = vpack.c.b16 %v529, %v526
  %v692 = vpack.c.b16 %v530, %v527
  %v693 = vpack.c.b16 %v534, %v531
  %v694 = vpack.c.b16 %v535, %v532
  %v695 = vpack.c.b16 %v536, %v533
  %v696 = vpack.c.b16 %v540, %v537
  %v697 = vpack.c.b16 %v541, %v538
  %v698 = vpack.c.b16 %v542, %v539
  %v699 = vpack.c.b16 %v546, %v543
  %v700 = vpack.c.b16 %v547, %v544
  %v701 = vpack.c.b16 %v548, %v545
  %v702 = vpack.c.b16 %v552, %v549
  %v703 = vpack.c.b16 %v553, %v550
  %v704 = vpack.c.b16 %v554, %v551
  %v705 = vpack.c.b16 %v558, %v555
  %v706 = vpack.c.b16 %v559, %v556
  %v707 = vpack.c.b16 %v560, %v557
  %v708 = vpack.c.b16 %v564, %v561
  %v709 = vpack.c.b16 %v565, %v562
  %v710 = vpack.c.b16 %v566, %v563
  %v711 = vpack.c.b16 %v570, %v567
  %v712 = vpack.c.b16 %v571, %v568
  %v713 = vpack.c.b16 %v572, %v569
  %v714 = vpack.c.b16 %v576, %v573
  %v715 = vpack.c.b16 %v577, %v574
  %v716 = vpack.c.b16 %v578, %v575
  %v717 = vpack.c.b16 %v582, %v579
  %v718 = vpack.c.b16 %v583, %v580
  %v719 = vpack.c.b16 %v584, %v581
  %v720 = vpack.c.b16 %v588, %v585
  %v721 = vpack.c.b16 %v589, %v586
  %v722 = vpack.c.b16 %v590, %v587
  %v723 = vpack.c.b16 %v594, %v591
  %v724 = vpack.c.b16 %v595, %v592
  %v725 = vpack.c.b16 %v596, %v593
  %v726 = vpack.c.b16 %v600, %v597
  %v727 = vpack.c.b16 %v601, %v598
  %v728 = vpack.c.b16 %v602, %v599
  %v729 = vpack.c.b16 %v606, %v603
  %v730 = vpack.c.b16 %v607, %v604
  %v731 = vpack.c.b16 %v608, %v605
  %v732 = vpack.c.b16 %v612, %v609
  %v733 = vpack.c.b16 %v613, %v610
  %v734 = vpack.c.b16 %v614, %v611
  %855 = vmatprep.subr.bf16.mxu0 %v616
  %856 = vmatpush1.bf16.msra.mxu0 %v615
  %857 = vmatprep.subr.bf16.mxu0 %v619
  %858 = vmatpush1.bf16.msra.mxu0 %v618
  %859 = vmatprep.subr.bf16.mxu0 %v622
  %860 = vmatpush1.bf16.msra.mxu0 %v621
  %861 = vmatprep.subr.bf16.mxu0 %v625
  %862 = vmatpush1.bf16.msra.mxu0 %v624
  %863 = vmatprep.subr.bf16.mxu0 %v628
  %864 = vmatpush1.bf16.msra.mxu0 %v627
  %865 = vmatprep.subr.bf16.mxu0 %v631
  %866 = vmatpush1.bf16.msra.mxu0 %v630
  %867 = vmatprep.subr.bf16.mxu0 %v634
  %868 = vmatpush1.bf16.msra.mxu0 %v633
  %869 = vmatprep.subr.bf16.mxu0 %v637
  %870 = vmatpush1.bf16.msra.mxu0 %v636
  %871 = vmatprep.subr.bf16.mxu0 %v640
  %872 = vmatpush1.bf16.msra.mxu0 %v639
  %873 = vmatprep.subr.bf16.mxu0 %v643
  %874 = vmatpush1.bf16.msra.mxu0 %v642
  %875 = vmatprep.subr.bf16.mxu0 %v646
  %876 = vmatpush1.bf16.msra.mxu0 %v645
  %877 = vmatprep.subr.bf16.mxu0 %v649
  %878 = vmatpush1.bf16.msra.mxu0 %v648
  %879 = vmatprep.subr.bf16.mxu0 %v652
  %880 = vmatpush1.bf16.msra.mxu0 %v651
  %881 = vmatprep.subr.bf16.mxu0 %v655
  %882 = vmatpush1.bf16.msra.mxu0 %v654
  %883 = vmatprep.subr.bf16.mxu0 %v658
  %884 = vmatpush1.bf16.msra.mxu0 %v657
  %885 = vmatprep.subr.bf16.mxu0 %v661
  %886 = vmatpush1.bf16.msra.mxu0 %v660
  %887 = vmatprep.mubr.bf16.mxu0 %v34
  %888 = vmatmul.mubr.bf16.gmra.mrb[0].mxu0 %v33
  %v889 = vpop.f32.mrb[0].mxu0
  %v890 = vadd.f32 %v203, %v889
  %v891 = vpop.f32.mrb[0].mxu0
  %v892 = vadd.f32 %v207, %v891
  %v893 = vpop.f32.mrb[0].mxu0
  %v894 = vadd.f32 %v203, %v893
  %v895 = vpop.f32.mrb[0].mxu0
  %v896 = vadd.f32 %v207, %v895
  %897 = vdwg.mxu0
  %898 = vmatprep.subr.bf16.mxu0 %v664
  %899 = vmatpush1.bf16.msra.mxu0 %v663
  %900 = vmatprep.subr.bf16.mxu0 %v667
  %901 = vmatpush1.bf16.msra.mxu0 %v666
  %902 = vmatprep.subr.bf16.mxu0 %v670
  %903 = vmatpush1.bf16.msra.mxu0 %v669
  %904 = vmatprep.subr.bf16.mxu0 %v673
  %905 = vmatpush1.bf16.msra.mxu0 %v672
  %906 = vmatprep.subr.bf16.mxu0 %v676
  %907 = vmatpush1.bf16.msra.mxu0 %v675
  %908 = vmatprep.subr.bf16.mxu0 %v679
  %909 = vmatpush1.bf16.msra.mxu0 %v678
  %910 = vmatprep.subr.bf16.mxu0 %v682
  %911 = vmatpush1.bf16.msra.mxu0 %v681
  %912 = vmatprep.subr.bf16.mxu0 %v685
  %913 = vmatpush1.bf16.msra.mxu0 %v684
  %914 = vmatprep.subr.bf16.mxu0 %v688
  %915 = vmatpush1.bf16.msra.mxu0 %v687
  %916 = vmatprep.subr.bf16.mxu0 %v691
  %917 = vmatpush1.bf16.msra.mxu0 %v690
  %918 = vmatprep.subr.bf16.mxu0 %v694
  %919 = vmatpush1.bf16.msra.mxu0 %v693
  %920 = vmatprep.subr.bf16.mxu0 %v697
  %921 = vmatpush1.bf16.msra.mxu0 %v696
  %922 = vmatprep.subr.bf16.mxu0 %v700
  %923 = vmatpush1.bf16.msra.mxu0 %v699
  %924 = vmatprep.subr.bf16.mxu0 %v703
  %925 = vmatpush1.bf16.msra.mxu0 %v702
  %926 = vmatprep.subr.bf16.mxu0 %v706
  %927 = vmatpush1.bf16.msra.mxu0 %v705
  %928 = vmatprep.subr.bf16.mxu0 %v709
  %929 = vmatpush1.bf16.msra.mxu0 %v708
  %930 = vmatprep.mubr.bf16.mxu0 %v36
  %931 = vmatmul.mubr.bf16.gmra.mrb[0].mxu0 %v35
  %v932 = vpop.f32.mrb[0].mxu0
  %v933 = vadd.f32 %v890, %v932
  %v934 = vpop.f32.mrb[0].mxu0
  %v935 = vadd.f32 %v892, %v934
  %v936 = vpop.f32.mrb[0].mxu0
  %v937 = vadd.f32 %v894, %v936
  %v938 = vpop.f32.mrb[0].mxu0
  %v939 = vadd.f32 %v896, %v938
  %940 = vdwg.mxu0
  %941 = vmatprep.subr.bf16.mxu0 %v712
  %942 = vmatpush1.bf16.msra.mxu0 %v711
  %943 = vmatprep.subr.bf16.mxu0 %v715
  %944 = vmatpush1.bf16.msra.mxu0 %v714
  %945 = vmatprep.subr.bf16.mxu0 %v718
  %946 = vmatpush1.bf16.msra.mxu0 %v717
  %947 = vmatprep.subr.bf16.mxu0 %v721
  %948 = vmatpush1.bf16.msra.mxu0 %v720
  %949 = vmatprep.subr.bf16.mxu0 %v724
  %950 = vmatpush1.bf16.msra.mxu0 %v723
  %951 = vmatprep.subr.bf16.mxu0 %v727
  %952 = vmatpush1.bf16.msra.mxu0 %v726
  %953 = vmatprep.subr.bf16.mxu0 %v730
  %954 = vmatpush1.bf16.msra.mxu0 %v729
  %955 = vmatprep.subr.bf16.mxu0 %v733
  %956 = vmatpush1.bf16.msra.mxu0 %v732
  %957 = vmatprep.subr.bf16.mxu0 0
  %958 = vmatpush1.bf16.msra.mxu0 0
  %959 = vmatprep.subr.bf16.mxu0 0
  %960 = vmatpush1.bf16.msra.mxu0 0
  %961 = vmatprep.subr.bf16.mxu0 0
  %962 = vmatpush1.bf16.msra.mxu0 0
  %963 = vmatprep.subr.bf16.mxu0 0
  %964 = vmatpush1.bf16.msra.mxu0 0
  %965 = vmatprep.subr.bf16.mxu0 0
  %966 = vmatpush1.bf16.msra.mxu0 0
  %967 = vmatprep.subr.bf16.mxu0 0
  %968 = vmatpush1.bf16.msra.mxu0 0
  %969 = vmatprep.subr.bf16.mxu0 0
  %970 = vmatpush1.bf16.msra.mxu0 0
  %971 = vmatprep.subr.bf16.mxu0 0
  %972 = vmatpush1.bf16.msra.mxu0 0
  %973 = vmatprep.mubr.bf16.mxu0 0
  %974 = vmatmul.mubr.bf16.gmra.mrb[0].mxu0 %v37
  %v975 = vpop.f32.mrb[0].mxu0
  %v976 = vadd.f32 %v933, %v975
  %v977 = vpop.f32.mrb[0].mxu0
  %v978 = vadd.f32 %v935, %v977
  %v979 = vpop.f32.mrb[0].mxu0
  %v980 = vadd.f32 %v937, %v979
  %v981 = vpop.f32.mrb[0].mxu0
  %v982 = vadd.f32 %v939, %v981
  %983 = vdwg.mxu0
  %984 = vmatprep.subr.bf16.mxu0 0
  %985 = vmatpush1.bf16.msra.mxu0 %v617
  %986 = vmatprep.subr.bf16.mxu0 0
  %987 = vmatpush1.bf16.msra.mxu0 %v620
  %988 = vmatprep.subr.bf16.mxu0 0
  %989 = vmatpush1.bf16.msra.mxu0 %v623
  %990 = vmatprep.subr.bf16.mxu0 0
  %991 = vmatpush1.bf16.msra.mxu0 %v626
  %992 = vmatprep.subr.bf16.mxu0 0
  %993 = vmatpush1.bf16.msra.mxu0 %v629
  %994 = vmatprep.subr.bf16.mxu0 0
  %995 = vmatpush1.bf16.msra.mxu0 %v632
  %996 = vmatprep.subr.bf16.mxu0 0
  %997 = vmatpush1.bf16.msra.mxu0 %v635
  %998 = vmatprep.subr.bf16.mxu0 0
  %999 = vmatpush1.bf16.msra.mxu0 %v638
  %1000 = vmatprep.subr.bf16.mxu0 0
  %1001 = vmatpush1.bf16.msra.mxu0 %v641
  %1002 = vmatprep.subr.bf16.mxu0 0
  %1003 = vmatpush1.bf16.msra.mxu0 %v644
  %1004 = vmatprep.subr.bf16.mxu0 0
  %1005 = vmatpush1.bf16.msra.mxu0 %v647
  %1006 = vmatprep.subr.bf16.mxu0 0
  %1007 = vmatpush1.bf16.msra.mxu0 %v650
  %1008 = vmatprep.subr.bf16.mxu0 0
  %1009 = vmatpush1.bf16.msra.mxu0 %v653
  %1010 = vmatprep.subr.bf16.mxu0 0
  %1011 = vmatpush1.bf16.msra.mxu0 %v656
  %1012 = vmatprep.subr.bf16.mxu0 0
  %1013 = vmatpush1.bf16.msra.mxu0 %v659
  %1014 = vmatprep.subr.bf16.mxu0 0
  %1015 = vmatpush1.bf16.msra.mxu0 %v662
  %1016 = vmatprep.mubr.bf16.mxu0 %v34
  %1017 = vmatmul.mubr.bf16.gmra.mrb[0].mxu0 %v33
  %v1018 = vpop.f32.mrb[0].mxu0
  %v1019 = vadd.f32 %v211, %v1018
  %v1020 = vpop.f32.mrb[0].mxu0
  %v1021 = vpop.f32.mrb[0].mxu0
  %v1022 = vadd.f32 %v211, %v1021
  %v1023 = vpop.f32.mrb[0].mxu0
  %1024 = vdwg.mxu0
  %1025 = vmatprep.subr.bf16.mxu0 0
  %1026 = vmatpush1.bf16.msra.mxu0 %v665
  %1027 = vmatprep.subr.bf16.mxu0 0
  %1028 = vmatpush1.bf16.msra.mxu0 %v668
  %1029 = vmatprep.subr.bf16.mxu0 0
  %1030 = vmatpush1.bf16.msra.mxu0 %v671
  %1031 = vmatprep.subr.bf16.mxu0 0
  %1032 = vmatpush1.bf16.msra.mxu0 %v674
  %1033 = vmatprep.subr.bf16.mxu0 0
  %1034 = vmatpush1.bf16.msra.mxu0 %v677
  %1035 = vmatprep.subr.bf16.mxu0 0
  %1036 = vmatpush1.bf16.msra.mxu0 %v680
  %1037 = vmatprep.subr.bf16.mxu0 0
  %1038 = vmatpush1.bf16.msra.mxu0 %v683
  %1039 = vmatprep.subr.bf16.mxu0 0
  %1040 = vmatpush1.bf16.msra.mxu0 %v686
  %1041 = vmatprep.subr.bf16.mxu0 0
  %1042 = vmatpush1.bf16.msra.mxu0 %v689
  %1043 = vmatprep.subr.bf16.mxu0 0
  %1044 = vmatpush1.bf16.msra.mxu0 %v692
  %1045 = vmatprep.subr.bf16.mxu0 0
  %1046 = vmatpush1.bf16.msra.mxu0 %v695
  %1047 = vmatprep.subr.bf16.mxu0 0
  %1048 = vmatpush1.bf16.msra.mxu0 %v698
  %1049 = vmatprep.subr.bf16.mxu0 0
  %1050 = vmatpush1.bf16.msra.mxu0 %v701
  %1051 = vmatprep.subr.bf16.mxu0 0
  %1052 = vmatpush1.bf16.msra.mxu0 %v704
  %1053 = vmatprep.subr.bf16.mxu0 0
  %1054 = vmatpush1.bf16.msra.mxu0 %v707
  %1055 = vmatprep.subr.bf16.mxu0 0
  %1056 = vmatpush1.bf16.msra.mxu0 %v710
  %1057 = vmatprep.mubr.bf16.mxu0 %v36
  %1058 = vmatmul.mubr.bf16.gmra.mrb[0].mxu0 %v35
  %v1059 = vpop.f32.mrb[0].mxu0
  %v1060 = vadd.f32 %v1019, %v1059
  %v1061 = vpop.f32.mrb[0].mxu0
  %v1062 = vpop.f32.mrb[0].mxu0
  %v1063 = vadd.f32 %v1022, %v1062
  %v1064 = vpop.f32.mrb[0].mxu0
  %1065 = vdwg.mxu0
  %1066 = vmatprep.subr.bf16.mxu0 0
  %1067 = vmatpush1.bf16.msra.mxu0 %v713
  %1068 = vmatprep.subr.bf16.mxu0 0
  %1069 = vmatpush1.bf16.msra.mxu0 %v716
  %1070 = vmatprep.subr.bf16.mxu0 0
  %1071 = vmatpush1.bf16.msra.mxu0 %v719
  %1072 = vmatprep.subr.bf16.mxu0 0
  %1073 = vmatpush1.bf16.msra.mxu0 %v722
  %1074 = vmatprep.subr.bf16.mxu0 0
  %1075 = vmatpush1.bf16.msra.mxu0 %v725
  %1076 = vmatprep.subr.bf16.mxu0 0
  %1077 = vmatpush1.bf16.msra.mxu0 %v728
  %1078 = vmatprep.subr.bf16.mxu0 0
  %1079 = vmatpush1.bf16.msra.mxu0 %v731
  %1080 = vmatprep.subr.bf16.mxu0 0
  %1081 = vmatpush1.bf16.msra.mxu0 %v734
  %1082 = vmatprep.subr.bf16.mxu0 0
  %1083 = vmatpush1.bf16.msra.mxu0 0
  %1084 = vmatprep.subr.bf16.mxu0 0
  %1085 = vmatpush1.bf16.msra.mxu0 0
  %1086 = vmatprep.subr.bf16.mxu0 0
  %1087 = vmatpush1.bf16.msra.mxu0 0
  %1088 = vmatprep.subr.bf16.mxu0 0
  %1089 = vmatpush1.bf16.msra.mxu0 0
  %1090 = vmatprep.subr.bf16.mxu0 0
  %1091 = vmatpush1.bf16.msra.mxu0 0
  %1092 = vmatprep.subr.bf16.mxu0 0
  %1093 = vmatpush1.bf16.msra.mxu0 0
  %1094 = vmatprep.subr.bf16.mxu0 0
  %1095 = vmatpush1.bf16.msra.mxu0 0
  %1096 = vmatprep.subr.bf16.mxu0 0
  %1097 = vmatpush1.bf16.msra.mxu0 0
  %1098 = vmatprep.mubr.bf16.mxu0 0
  %1099 = vmatmul.mubr.bf16.gmra.mrb[0].mxu0 %v37
  %v1100 = vpop.f32.mrb[0].mxu0
  %v1101 = vadd.f32 %v1060, %v1100
  %v1102 = vpop.f32.mrb[0].mxu0
  %v1103 = vpop.f32.mrb[0].mxu0
  %v1104 = vadd.f32 %v1063, %v1103
  %v1105 = vpop.f32.mrb[0].mxu0
  %1106 = vdwg.mxu0
  %v1107 = vmax.f32 %v976, 0.0
  %v1108 = vmax.f32 %v978, 0.0
  %v1109 = vmax.f32 %v1101, 0.0
  %v1110 = vmax.f32 %v980, 0.0
  %v1111 = vmax.f32 %v982, 0.0
  %v1112 = vmax.f32 %v1104, 0.0
  %v1113 = vld [vmem:[%s3] sm:$0xff]
  %v1114 = vld [vmem:[%s3 + $0x8] sm:$0xff]
  %v1115 = vld [vmem:[%s3 + $0x10] sm:$0xff]
  %v1116 = vld [vmem:[%s3 + $0x18] sm:$0xff]
  %v1117 = vld [vmem:[%s3 + $0x20] sm:$0xff]
  %v1118 = vld [vmem:[%s3 + $0x28] sm:$0xff]
  %v1119 = vld [vmem:[%s3 + $0x30] sm:$0xff]
  %v1120 = vld [vmem:[%s3 + $0x38] sm:$0xff]
  %v1121 = vld [vmem:[%s3 + $0x40] sm:$0xff]
  %v1122 = vld [vmem:[%s3 + $0x48] sm:$0xff]
  %v1123 = vld [vmem:[%s3 + $0x50] sm:$0xff]
  %v1124 = vld [vmem:[%s3 + $0x58] sm:$0xff]
  %v1125 = vld [vmem:[%s3 + $0x60] sm:$0xff]
  %v1126 = vld [vmem:[%s3 + $0x68] sm:$0xff]
  %v1127 = vld [vmem:[%s3 + $0x70] sm:$0xff]
  %v1128 = vld [vmem:[%s3 + $0x78] sm:$0xff]
  %v1129 = vld [vmem:[%s3 + $0x80] sm:$0xff]
  %v1130 = vld [vmem:[%s3 + $0x88] sm:$0xff]
  %v1131 = vld [vmem:[%s3 + $0x90] sm:$0xff]
  %v1132 = vld [vmem:[%s3 + $0x98] sm:$0xff]
  %v1133 = vld [vmem:[%s3 + $0xa0] sm:$0xff]
  %v1134 = vld [vmem:[%s3 + $0xa8] sm:$0xff]
  %v1135 = vld [vmem:[%s3 + $0xb0] sm:$0xff]
  %v1136 = vld [vmem:[%s3 + $0xb8] sm:$0xff]
  %v1137 = vld [vmem:[%s3 + $0xc0] sm:$0xff]
  %v1138 = vld [vmem:[%s3 + $0xc8] sm:$0xff]
  %v1139 = vld [vmem:[%s3 + $0xd0] sm:$0xff]
  %v1140 = vld [vmem:[%s3 + $0xd8] sm:$0xff]
  %v1141 = vld [vmem:[%s3 + $0xe0] sm:$0xff]
  %v1142 = vld [vmem:[%s3 + $0xe8] sm:$0xff]
  %v1143 = vld [vmem:[%s3 + $0xf0] sm:$0xff]
  %v1144 = vld [vmem:[%s3 + $0xf8] sm:$0xff]
  %v1145 = vld [vmem:[%s3 + $0x100] sm:$0xff]
  %v1146 = vld [vmem:[%s3 + $0x108] sm:$0xff]
  %v1147 = vld [vmem:[%s3 + $0x110] sm:$0xff]
  %v1148 = vld [vmem:[%s3 + $0x118] sm:$0xff]
  %v1149 = vld [vmem:[%s3 + $0x120] sm:$0xff]
  %v1150 = vld [vmem:[%s3 + $0x128] sm:$0xff]
  %v1151 = vld [vmem:[%s3 + $0x130] sm:$0xff]
  %v1152 = vld [vmem:[%s3 + $0x138] sm:$0xff]
  %v1153 = vld [vmem:[#allocation2] sm:$0x1]
  %v1155 = vlaneseq
  %v1156 = vshrl.u32 %v1155, 7
  %v1157 = vsub.s32 0, %v1156
  %v1158 = vrot.slane %v1153, %v1157
  %1159 = vset.pattern.permute.xlu0 0
  %1160 = vperm.xlu0 %1159, %v1158
  %v1161 = vpop.permute.xlu0 %1160
  %vm1163 = vcmask 523264
  %v1165 = vsel %vm1163, %v1109, 0
  %v1168 = vsel %vm1163, %v1112, 0
  %1170 = vmatprep.subr.mxu0 0.0
  %1171 = vmatpush1.msra.mxu0 %v1113
  %1172 = vmatprep.subr.mxu0 0.0
  %1173 = vmatpush1.msra.mxu0 %v1114
  %1174 = vmatprep.subr.mxu0 0.0
  %1175 = vmatpush1.msra.mxu0 %v1115
  %1176 = vmatprep.subr.mxu0 0.0
  %1177 = vmatpush1.msra.mxu0 %v1116
  %1178 = vmatprep.subr.mxu0 0.0
  %1179 = vmatpush1.msra.mxu0 %v1117
  %1180 = vmatprep.subr.mxu0 0.0
  %1181 = vmatpush1.msra.mxu0 %v1118
  %1182 = vmatprep.subr.mxu0 0.0
  %1183 = vmatpush1.msra.mxu0 %v1119
  %1184 = vmatprep.subr.mxu0 0.0
  %1185 = vmatpush1.msra.mxu0 %v1120
  %1186 = vmatprep.subr.mxu0 0.0
  %1187 = vmatpush1.msra.mxu0 %v1121
  %1188 = vmatprep.subr.mxu0 0.0
  %1189 = vmatpush1.msra.mxu0 %v1122
  %1190 = vmatprep.subr.mxu0 0.0
  %1191 = vmatpush1.msra.mxu0 %v1123
  %1192 = vmatprep.subr.mxu0 0.0
  %1193 = vmatpush1.msra.mxu0 %v1124
  %1194 = vmatprep.subr.mxu0 0.0
  %1195 = vmatpush1.msra.mxu0 %v1125
  %1196 = vmatprep.subr.mxu0 0.0
  %1197 = vmatpush1.msra.mxu0 %v1126
  %1198 = vmatprep.subr.mxu0 0.0
  %1199 = vmatpush1.msra.mxu0 %v1127
  %1200 = vmatprep.subr.mxu0 0.0
  %1201 = vmatpush1.msra.mxu0 %v1128
  %1202 = vmatprep.subr.mxu0 0.0
  %1203 = vmatpush1.msra.mxu0 %v1129
  %1204 = vmatprep.subr.mxu0 0.0
  %1205 = vmatpush1.msra.mxu0 %v1130
  %1206 = vmatprep.subr.mxu0 0.0
  %1207 = vmatpush1.msra.mxu0 %v1131
  %1208 = vmatprep.subr.mxu0 0.0
  %1209 = vmatpush1.msra.mxu0 %v1132
  %1210 = vmatprep.subr.mxu0 0.0
  %1211 = vmatpush1.msra.mxu0 %v1133
  %1212 = vmatprep.subr.mxu0 0.0
  %1213 = vmatpush1.msra.mxu0 %v1134
  %1214 = vmatprep.subr.mxu0 0.0
  %1215 = vmatpush1.msra.mxu0 %v1135
  %1216 = vmatprep.subr.mxu0 0.0
  %1217 = vmatpush1.msra.mxu0 %v1136
  %1218 = vmatprep.subr.mxu0 0.0
  %1219 = vmatpush1.msra.mxu0 %v1137
  %1220 = vmatprep.subr.mxu0 0.0
  %1221 = vmatpush1.msra.mxu0 %v1138
  %1222 = vmatprep.subr.mxu0 0.0
  %1223 = vmatpush1.msra.mxu0 %v1139
  %1224 = vmatprep.subr.mxu0 0.0
  %1225 = vmatpush1.msra.mxu0 %v1140
  %1226 = vmatprep.subr.mxu0 0.0
  %1227 = vmatpush1.msra.mxu0 %v1141
  %1228 = vmatprep.subr.mxu0 0.0
  %1229 = vmatpush1.msra.mxu0 %v1142
  %1230 = vmatprep.subr.mxu0 0.0
  %1231 = vmatpush1.msra.mxu0 %v1143
  %1232 = vmatprep.subr.mxu0 0.0
  %1233 = vmatpush1.msra.mxu0 %v1144
  %1234 = vmatprep.mubr.f32.mxu0 %v1108
  %1235 = vmatmul.mubr.f32.gmra.mrb[0].mxu0 %v1107
  %v1236 = vpop.f32.mrb[0].mxu0
  %v1237 = vadd.f32 %v1161, %v1236
  %v1238 = vpop.f32.mrb[0].mxu0
  %1239 = vmatprep.mubr.f32.mxu0 %v1111
  %1240 = vmatmul.mubr.f32.gmra.mrb[0].mxu0 %v1110
  %v1241 = vpop.f32.mrb[0].mxu0
  %v1242 = vadd.f32 %v1161, %v1241
  %v1243 = vpop.f32.mrb[0].mxu0
  %1244 = vdwg.mxu0
  %1245 = vmatprep.subr.mxu0 0.0
  %1246 = vmatpush1.msra.mxu0 %v1145
  %1247 = vmatprep.subr.mxu0 0.0
  %1248 = vmatpush1.msra.mxu0 %v1146
  %1249 = vmatprep.subr.mxu0 0.0
  %1250 = vmatpush1.msra.mxu0 %v1147
  %1251 = vmatprep.subr.mxu0 0.0
  %1252 = vmatpush1.msra.mxu0 %v1148
  %1253 = vmatprep.subr.mxu0 0.0
  %1254 = vmatpush1.msra.mxu0 %v1149
  %1255 = vmatprep.subr.mxu0 0.0
  %1256 = vmatpush1.msra.mxu0 %v1150
  %1257 = vmatprep.subr.mxu0 0.0
  %1258 = vmatpush1.msra.mxu0 %v1151
  %1259 = vmatprep.subr.mxu0 0.0
  %1260 = vmatpush1.msra.mxu0 %v1152
  %1261 = vmatprep.subr.mxu0 0.0
  %1262 = vmatpush1.msra.mxu0 0.0
  %1263 = vmatprep.subr.mxu0 0.0
  %1264 = vmatpush1.msra.mxu0 0.0
  %1265 = vmatprep.subr.mxu0 0.0
  %1266 = vmatpush1.msra.mxu0 0.0
  %1267 = vmatprep.subr.mxu0 0.0
  %1268 = vmatpush1.msra.mxu0 0.0
  %1269 = vmatprep.subr.mxu0 0.0
  %1270 = vmatpush1.msra.mxu0 0.0
  %1271 = vmatprep.subr.mxu0 0.0
  %1272 = vmatpush1.msra.mxu0 0.0
  %1273 = vmatprep.subr.mxu0 0.0
  %1274 = vmatpush1.msra.mxu0 0.0
  %1275 = vmatprep.subr.mxu0 0.0
  %1276 = vmatpush1.msra.mxu0 0.0
  %1277 = vmatprep.subr.mxu0 0.0
  %1278 = vmatpush1.msra.mxu0 0.0
  %1279 = vmatprep.subr.mxu0 0.0
  %1280 = vmatpush1.msra.mxu0 0.0
  %1281 = vmatprep.subr.mxu0 0.0
  %1282 = vmatpush1.msra.mxu0 0.0
  %1283 = vmatprep.subr.mxu0 0.0
  %1284 = vmatpush1.msra.mxu0 0.0
  %1285 = vmatprep.subr.mxu0 0.0
  %1286 = vmatpush1.msra.mxu0 0.0
  %1287 = vmatprep.subr.mxu0 0.0
  %1288 = vmatpush1.msra.mxu0 0.0
  %1289 = vmatprep.subr.mxu0 0.0
  %1290 = vmatpush1.msra.mxu0 0.0
  %1291 = vmatprep.subr.mxu0 0.0
  %1292 = vmatpush1.msra.mxu0 0.0
  %1293 = vmatprep.subr.mxu0 0.0
  %1294 = vmatpush1.msra.mxu0 0.0
  %1295 = vmatprep.subr.mxu0 0.0
  %1296 = vmatpush1.msra.mxu0 0.0
  %1297 = vmatprep.subr.mxu0 0.0
  %1298 = vmatpush1.msra.mxu0 0.0
  %1299 = vmatprep.subr.mxu0 0.0
  %1300 = vmatpush1.msra.mxu0 0.0
  %1301 = vmatprep.subr.mxu0 0.0
  %1302 = vmatpush1.msra.mxu0 0.0
  %1303 = vmatprep.subr.mxu0 0.0
  %1304 = vmatpush1.msra.mxu0 0.0
  %1305 = vmatprep.subr.mxu0 0.0
  %1306 = vmatpush1.msra.mxu0 0.0
  %1307 = vmatprep.subr.mxu0 0.0
  %1308 = vmatpush1.msra.mxu0 0.0
  %1309 = vmatprep.mubr.f32.mxu0 0.0
  %1310 = vmatmul.mubr.f32.gmra.mrb[0].mxu0 %v1165
  %v1311 = vpop.f32.mrb[0].mxu0
  %v1312 = vadd.f32 %v1237, %v1311
  %v1313 = vpop.f32.mrb[0].mxu0
  %1314 = vmatprep.mubr.f32.mxu0 0.0
  %1315 = vmatmul.mubr.f32.gmra.mrb[0].mxu0 %v1168
  %v1316 = vpop.f32.mrb[0].mxu0
  %v1317 = vadd.f32 %v1242, %v1316
  %v1318 = vpop.f32.mrb[0].mxu0
  %1319 = vdwg.mxu0
  %vm1320 = vcmask 261120
  %1321 = vst.msk [vmem:[%s5] sm:$0xff] %vm1320, %v1312
  %1322 = vst.msk [vmem:[%s5 + $0x8] sm:$0xff] %vm1320, %v1317
  // Predicated region
  $region22: #{complementary_network_forward.1} parent=0 // pred_check
    _
  $region23: #{complementary_network_forward.1} parent=0 // pred_check_branch
    %1324 = sbr.rel (0) target = $region25
  $region24: #{complementary_network_forward.1} parent=0 // pred_region
    _
  $region25: #{complementary_network_forward.1} parent=0 // pred_fallthru
    _
  // Predicated region
  $region26: #{complementary_network_forward.1} parent=0 // pred_check
    _
  $region27: #{complementary_network_forward.1} parent=0 // pred_check_branch
    %1326 = sbr.rel (0) target = $region29
  $region28: #{complementary_network_forward.1} parent=0 // pred_region
    _
  $region29: #{complementary_network_forward.1} parent=0 // pred_fallthru
    _

</llo_original>
